<compile_context>
chip_gen: v6e
topology: v6e:2x2x1
jax: 0.10.0
libtpu: 0.0.40
codegen_flags: <defaults>
</compile_context>

<pallas_src>
import functools

import jax
import jax.numpy as jnp
from jax.experimental import pallas as pl
from jax.experimental.pallas import tpu as pltpu

NUM_NEURONS = 20
LEAKY_SLOPE = 0.01      # nn.LeakyReLU default negative_slope
LANES = 128             # TPU lane width; packed params / hidden activations use it


def _round_up(n, m):
    return ((n + m - 1) // m) * m


def _param_offsets(d_in):
    """Row offsets of each (padded) parameter block inside the packed slab."""
    off_b1 = _round_up(d_in, 8)
    off_w2 = off_b1 + 8
    off_b2 = off_w2 + LANES
    off_w3 = off_b2 + 8
    off_b3 = off_w3 + LANES
    rows = off_b3 + 8
    return off_b1, off_w2, off_b2, off_w3, off_b3, rows


def pack_params(params):
    """Pack (w1,b1,w2,b2,w3,b3) into a single lane-dense [rows, 128] f32 slab.

    Hidden/output dims are zero-padded to 128 lanes so that all in-kernel
    matmuls, bias adds and activations are full-lane and the whole parameter
    set moves HBM->VMEM as one DMA.  Zero-padded hidden units stay exactly
    zero through LeakyReLU, so numerics match the unpadded MLP.
    """
    w1, b1, w2, b2, w3, b3 = params
    d_in, hid = w1.shape
    d_out = w3.shape[1]
    assert hid <= LANES and d_out <= LANES, \
        "TODO(synk): tile hidden/output dims wider than 128 lanes"
    off_b1, off_w2, off_b2, off_w3, off_b3, rows = _param_offsets(d_in)
    p = jnp.zeros((rows, LANES), jnp.float32)
    p = p.at[:d_in, :hid].set(w1.astype(jnp.float32))
    p = p.at[off_b1, :hid].set(b1.reshape(-1).astype(jnp.float32))
    p = p.at[off_w2:off_w2 + hid, :hid].set(w2.astype(jnp.float32))
    p = p.at[off_b2, :hid].set(b2.reshape(-1).astype(jnp.float32))
    p = p.at[off_w3:off_w3 + hid, :d_out].set(w3.astype(jnp.float32))
    p = p.at[off_b3, :d_out].set(b3.reshape(-1).astype(jnp.float32))
    return p


def _leaky_relu(x):
    # max(x, slope*x) == LeakyReLU for 0 < slope < 1: one mul + one max on VPU.
    return jnp.maximum(x, LEAKY_SLOPE * x)


def _transition_kernel(x_ref, p_ref, o_ref, *, d_in, d_out, use_bf16):
    off_b1, off_w2, off_b2, off_w3, off_b3, _ = _param_offsets(d_in)
    x = x_ref[...]                                  # (TB, d_in) f32
    w1 = p_ref[0:d_in, :]                           # (d_in, 128)
    b1 = p_ref[off_b1:off_b1 + 1, :]                # (1, 128)
    w2 = p_ref[off_w2:off_w2 + LANES, :]            # (128, 128)
    b2 = p_ref[off_b2:off_b2 + 1, :]
    w3 = p_ref[off_w3:off_w3 + LANES, :]            # (128, 128)
    b3 = p_ref[off_b3:off_b3 + 1, :]

    def mm(a, w):
        # Optionally feed the MXU bf16 operands (native single-pass rate);
        # accumulation stays f32.  Elementwise math stays f32 (v5e has no
        # bf16 VPU/EUP).
        if use_bf16:
            a = a.astype(jnp.bfloat16)
            w = w.astype(jnp.bfloat16)
        return jnp.dot(a, w, preferred_element_type=jnp.float32)

    h = _leaky_relu(mm(x, w1) + b1)                 # (TB, 128) f32
    h = _leaky_relu(mm(h, w2) + b2)
    h = mm(h, w3) + b3
    z = h[:, :d_out]                                # keep only real output lanes
    # sigmoid(z) = 0.5*(tanh(z/2)+1): single EUP op, no +inf at the tails.
    o_ref[...] = 0.5 * (jnp.tanh(0.5 * z) + 1.0)    # (TB, d_out)


def _choose_tb(B, tb):
    """Batch tile: multiple of 8, <= tb, and small enough that the grid has
    >=2 steps whenever B > 8 (so both v7x TensorCores get work)."""
    B8 = _round_up(B, 8)
    tb = max(8, _round_up(tb, 8))
    half = _round_up((B8 + 1) // 2, 8)
    return min(tb, half)


def transition_model_forward(x, packed_params, state_dim, *, tb=1024,
                             use_bf16=False):
    """x: [B, state_dim + action_dim] -> [B, 2, state_dim]."""
    B, d_in = x.shape
    d_out = 2 * state_dim
    rows, lanes = packed_params.shape

    TB = _choose_tb(B, tb)
    B_pad = _round_up(B, TB)
    if B_pad != B:
        x = jnp.pad(x, ((0, B_pad - B), (0, 0)))

    kernel = functools.partial(_transition_kernel, d_in=d_in, d_out=d_out,
                               use_bf16=use_bf16)
    out = pl.pallas_call(
        kernel,
        out_shape=jax.ShapeDtypeStruct((B_pad, d_out), jnp.float32),
        grid=(B_pad // TB,),
        in_specs=[
            # x: one (TB, d_in) block per grid step -> pipelined DMA-in.
            pl.BlockSpec((TB, d_in), lambda i: (i, 0)),
            # packed params: constant block index -> fetched once, VMEM-resident.
            pl.BlockSpec((rows, lanes), lambda i: (0, 0)),
        ],
        # output block width == full array width (d_out): contiguous DMA,
        # only real columns ever touch HBM.
        out_specs=pl.BlockSpec((TB, d_out), lambda i: (i, 0)),
        compiler_params=pltpu.CompilerParams(
            dimension_semantics=("parallel",)),
    )(x, packed_params)

    return out[:B].reshape(B, 2, state_dim)


def init_params(key, state_dim, action_dim):
    """Deterministic init mimicking PyTorch Linear default U(-1/sqrt(fan_in), +)."""
    d_in = state_dim + action_dim
    dims = [(d_in, NUM_NEURONS), (NUM_NEURONS, NUM_NEURONS),
            (NUM_NEURONS, 2 * state_dim)]
    params = []
    for fin, fout in dims:
        key, kw, kb = jax.random.split(key, 3)
        bound = 1.0 / jnp.sqrt(fin)
        w = jax.random.uniform(kw, (fin, fout), jnp.float32, -bound, bound)
        b = jax.random.uniform(kb, (1, fout), jnp.float32, -bound, bound)
        params += [w, b]
    return params


def reference_forward(x, params, state_dim):
    """Plain-JAX reference for correctness check."""
    w1, b1, w2, b2, w3, b3 = params
    h = jax.nn.leaky_relu(x @ w1 + b1, LEAKY_SLOPE)
    h = jax.nn.leaky_relu(h @ w2 + b2, LEAKY_SLOPE)
    h = jax.nn.sigmoid(h @ w3 + b3)
    return h.reshape(-1, 2, state_dim)


if __name__ == "__main__":
    state_dim = 16
    action_dim = 8

    key = jax.random.PRNGKey(0)
    params = init_params(key, state_dim, action_dim)
    packed = pack_params(params)

    # Small case (matches the module spec).
    key, kx = jax.random.split(key)
    x = jax.random.normal(kx, (8, state_dim + action_dim), jnp.float32)
    out = jax.block_until_ready(transition_model_forward(x, packed, state_dim))
    ref = reference_forward(x, params, state_dim)
    assert out.shape == (8, 2, state_dim)
    assert jnp.allclose(out, ref, atol=1e-5, rtol=1e-5)

    # Larger ragged batch: exercises batch tiling, row padding and a >1 grid.
    key, kx2 = jax.random.split(key)
    x2 = jax.random.normal(kx2, (200, state_dim + action_dim), jnp.float32)
    out2 = jax.block_until_ready(
        transition_model_forward(x2, packed, state_dim, tb=64))
    ref2 = reference_forward(x2, params, state_dim)
    assert out2.shape == (200, 2, state_dim)
    assert jnp.allclose(out2, ref2, atol=1e-5, rtol=1e-5)

    # Gated bf16-matmul fast path (native MXU rate); looser tolerance.
    out3 = jax.block_until_ready(
        transition_model_forward(x2, packed, state_dim, use_bf16=True))
    assert out3.shape == (200, 2, state_dim)
    assert jnp.allclose(out3, ref2, atol=5e-2, rtol=0)

    print("KERNEL_OK")
</pallas_src>

<mosaic_0001>
module attributes {stable_mosaic.version = 11 : i64} {
  func.func @_transition_kernel(%arg0: i32, %arg1: memref<8x24xf32, #tpu.memory_space<vmem>>, %arg2: memref<304x128xf32, #tpu.memory_space<vmem>>, %arg3: memref<8x32xf32, #tpu.memory_space<vmem>>) attributes {dimension_semantics = [#tpu.dimension_semantics<parallel>], iteration_bounds = array<i64: 1>, scalar_prefetch = 0 : i64, scratch_operands = 0 : i64, tpu.core_type = #tpu.core_type<tc>, window_params = [{transform_indices = @transform_0, window_bounds = array<i64: 8, 24>}, {pipeline_mode = #tpu.pipeline_mode<synchronous>, transform_indices = @transform_1, window_bounds = array<i64: 304, 128>}, {transform_indices = @transform_2, window_bounds = array<i64: 8, 32>}]} {
    %c0 = arith.constant 0 : index
    %c0_0 = arith.constant 0 : index
    %0 = vector.load %arg1[%c0, %c0_0] : memref<8x24xf32, #tpu.memory_space<vmem>>, vector<8x24xf32>
    %c0_1 = arith.constant 0 : index
    %c0_2 = arith.constant 0 : index
    %1 = vector.load %arg2[%c0_1, %c0_2] : memref<304x128xf32, #tpu.memory_space<vmem>>, vector<24x128xf32>
    %c24 = arith.constant 24 : index
    %c0_3 = arith.constant 0 : index
    %2 = vector.load %arg2[%c24, %c0_3] : memref<304x128xf32, #tpu.memory_space<vmem>>, vector<1x128xf32>
    %c32 = arith.constant 32 : index
    %c0_4 = arith.constant 0 : index
    %3 = vector.load %arg2[%c32, %c0_4] : memref<304x128xf32, #tpu.memory_space<vmem>>, vector<128x128xf32>
    %c160 = arith.constant 160 : index
    %c0_5 = arith.constant 0 : index
    %4 = vector.load %arg2[%c160, %c0_5] : memref<304x128xf32, #tpu.memory_space<vmem>>, vector<1x128xf32>
    %c168 = arith.constant 168 : index
    %c0_6 = arith.constant 0 : index
    %5 = vector.load %arg2[%c168, %c0_6] : memref<304x128xf32, #tpu.memory_space<vmem>>, vector<128x128xf32>
    %c296 = arith.constant 296 : index
    %c0_7 = arith.constant 0 : index
    %6 = vector.load %arg2[%c296, %c0_7] : memref<304x128xf32, #tpu.memory_space<vmem>>, vector<1x128xf32>
    %cst = arith.constant dense<0.000000e+00> : vector<8x128xf32>
    %7 = tpu.matmul %0, %1, %cst {dimension_numbers = #tpu.dot_dimension_numbers<[1], [0], [0], [1], [0, 0, 1, 1], [], []>} : vector<8x24xf32>, vector<24x128xf32>, vector<8x128xf32> -> vector<8x128xf32>
    %8 = vector.broadcast %2 : vector<1x128xf32> to vector<8x128xf32>
    %9 = arith.addf %7, %8 : vector<8x128xf32>
    %cst_8 = arith.constant 0.00999999977 : f32
    %10 = vector.broadcast %cst_8 : f32 to vector<8x128xf32>
    %11 = arith.mulf %10, %9 : vector<8x128xf32>
    %12 = arith.maximumf %9, %11 : vector<8x128xf32>
    %cst_9 = arith.constant dense<0.000000e+00> : vector<8x128xf32>
    %13 = tpu.matmul %12, %3, %cst_9 {dimension_numbers = #tpu.dot_dimension_numbers<[1], [0], [0], [1], [0, 0, 1, 1], [], []>} : vector<8x128xf32>, vector<128x128xf32>, vector<8x128xf32> -> vector<8x128xf32>
    %14 = vector.broadcast %4 : vector<1x128xf32> to vector<8x128xf32>
    %15 = arith.addf %13, %14 : vector<8x128xf32>
    %cst_10 = arith.constant 0.00999999977 : f32
    %16 = vector.broadcast %cst_10 : f32 to vector<8x128xf32>
    %17 = arith.mulf %16, %15 : vector<8x128xf32>
    %18 = arith.maximumf %15, %17 : vector<8x128xf32>
    %cst_11 = arith.constant dense<0.000000e+00> : vector<8x128xf32>
    %19 = tpu.matmul %18, %5, %cst_11 {dimension_numbers = #tpu.dot_dimension_numbers<[1], [0], [0], [1], [0, 0, 1, 1], [], []>} : vector<8x128xf32>, vector<128x128xf32>, vector<8x128xf32> -> vector<8x128xf32>
    %20 = vector.broadcast %6 : vector<1x128xf32> to vector<8x128xf32>
    %21 = arith.addf %19, %20 : vector<8x128xf32>
    %22 = vector.extract_strided_slice %21 {offsets = [0, 0], sizes = [8, 32], strides = [1, 1]} : vector<8x128xf32> to vector<8x32xf32>
    %cst_12 = arith.constant 5.000000e-01 : f32
    %23 = vector.broadcast %cst_12 : f32 to vector<8x32xf32>
    %24 = arith.mulf %23, %22 : vector<8x32xf32>
    %25 = math.tanh %24 : vector<8x32xf32>
    %cst_13 = arith.constant 1.000000e+00 : f32
    %26 = vector.broadcast %cst_13 : f32 to vector<8x32xf32>
    %27 = arith.addf %25, %26 : vector<8x32xf32>
    %cst_14 = arith.constant 5.000000e-01 : f32
    %28 = vector.broadcast %cst_14 : f32 to vector<8x32xf32>
    %29 = arith.mulf %28, %27 : vector<8x32xf32>
    %c0_15 = arith.constant 0 : index
    %c0_16 = arith.constant 0 : index
    %30 = vector.load %arg3[%c0_15, %c0_16] : memref<8x32xf32, #tpu.memory_space<vmem>>, vector<8x32xf32>
    tpu.vector_store %arg3[%c0_15, %c0_16], %29 {strides = array<i32>} : memref<8x32xf32, #tpu.memory_space<vmem>>, vector<8x32xf32>,
    return
  }
  func.func @transform_0(%arg0: i32) -> (i32, i32) {
    %c0_i32 = arith.constant 0 : i32
    %c0_i32_0 = arith.constant 0 : i32
    return %arg0, %c0_i32 : i32, i32
  }
  func.func @transform_1(%arg0: i32) -> (i32, i32) {
    %c0_i32 = arith.constant 0 : i32
    %c0_i32_0 = arith.constant 0 : i32
    %c0_i32_1 = arith.constant 0 : i32
    return %c0_i32, %c0_i32_0 : i32, i32
  }
  func.func @transform_2(%arg0: i32) -> (i32, i32) {
    %c0_i32 = arith.constant 0 : i32
    %c0_i32_0 = arith.constant 0 : i32
    return %arg0, %c0_i32 : i32, i32
  }
}

</mosaic_0001>

<llo_original>
// kernel: tpu_custom_call.1
$region0: #{tpu_custom_call.1}
  #allocation0 [shape = 'u32[]', space=smem, size = 0x4, offset = 0x4, fixed_abs, tag = 'smem constant byte address 0x4 - core index']
  #allocation1 [shape = 'u32[144,128]{1,0:T(1,128)}', space=vmem, size = 0x12000, scoped, tag = 'internal scratch']
  %s0 = inlined_call_operand.hbm [shape: f32[8,24], index: 0, kind: input, shape index: {}]
  %s1 = inlined_call_operand.hbm [shape: f32[304,128], index: 1, kind: input, shape index: {}]
  %s2 = inlined_call_operand.hbm [shape: f32[8,32], index: 2, kind: output, shape index: {}]
  %s3 = sld [smem:[#allocation0]]
  $region26: #{tpu_custom_call.1} parent=0
    _
  %s5 = ssub.s32 1, %s3
  %s6 = scalar_select 0, %s5, %s3
  $region1: #{tpu_custom_call.1} parent=0
    #allocation2 [shape = 'u8[4096]{0}', space=vmem, size = 0x1000, scoped, tag = 'input window, operand 0, single buffered']
    #allocation3 [shape = 's32[1]{0}', space=sflag, size = 0x4, scoped, tag = 'scoped memory for tpu_custom_call.1']
    #allocation4 [shape = 's32[1]{0}', space=sflag, size = 0x4, scoped, tag = 'scoped memory for tpu_custom_call.1']
    #allocation5 [shape = 'u8[155648]{0}', space=vmem, size = 0x26000, scoped, tag = 'input window, operand 1, single buffered']
    #allocation6 [shape = 's32[1]{0}', space=sflag, size = 0x4, scoped, tag = 'scoped memory for tpu_custom_call.1']
    #allocation7 [shape = 'u8[4096]{0}', space=vmem, size = 0x1000, scoped, tag = 'output window, operand 0, single buffered']
    %7 = vsyncpa [#allocation3], 0
    %8 = vsyncpa [#allocation6], 0
    %9 = vsyncpa [#allocation4], 0
    // Predicated region
    $region2: #{tpu_custom_call.1} parent=1 // pred_check
      _
    $region3: #{tpu_custom_call.1} parent=1 // pred_check_branch
      %11 = sbr.rel (0) target = $region5
    $region4: #{tpu_custom_call.1} parent=1 // pred_region
      %s13 = ssub.s32 128, 128
      %14 = vsyncadd [#allocation3], %s13
      %s16 = sshll.u32 [#allocation2], 4
      %s17 = int_to_ptr.vmem [resolvable:$true] %s16
      %19 = dma.hbm_to_vmem [thread:$0]  %s0, 128, %s17, [#allocation3]
    $region5: #{tpu_custom_call.1} parent=1 // pred_fallthru
      _
    // Predicated region
    $region6: #{tpu_custom_call.1} parent=1 // pred_check
      _
    $region7: #{tpu_custom_call.1} parent=1 // pred_check_branch
      %21 = sbr.rel (0) target = $region9
    $region8: #{tpu_custom_call.1} parent=1 // pred_region
      %s23 = ssub.s32 4864, 4864
      %24 = vsyncadd [#allocation6], %s23
      %s25 = sshll.u32 [#allocation5], 4
      %s26 = int_to_ptr.vmem [resolvable:$true] %s25
      %31 = dma.hbm_to_vmem [thread:$0]  %s1, 4864, %s26, [#allocation6], 128, 128, 8
    $region9: #{tpu_custom_call.1} parent=1 // pred_fallthru
      _
    // Predicated region
    $region10: #{tpu_custom_call.1} parent=1 // pred_check
      _
    $region11: #{tpu_custom_call.1} parent=1 // pred_check_branch
      %33 = sbr.rel (0) target = $region13
    $region12: #{tpu_custom_call.1} parent=1 // pred_region
      %34 = dma.done [#allocation3], 128
    $region13: #{tpu_custom_call.1} parent=1 // pred_fallthru
      _
    // Predicated region
    $region14: #{tpu_custom_call.1} parent=1 // pred_check
      _
    $region15: #{tpu_custom_call.1} parent=1 // pred_check_branch
      %36 = sbr.rel (0) target = $region17
    $region16: #{tpu_custom_call.1} parent=1 // pred_region
      %37 = dma.done [#allocation6], 4864
    $region17: #{tpu_custom_call.1} parent=1 // pred_fallthru
      _
    %v38 = vld [vmem:[#allocation2] sm:$0xff]
    %v39 = vld [vmem:[#allocation5] sm:$0xff]
    %v40 = vld [vmem:[#allocation5 + $0x8] sm:$0xff]
    %v41 = vld [vmem:[#allocation5 + $0x10] sm:$0xff]
    %v42 = vld [vmem:[#allocation5 + $0x18] sm:$0x1]
    %v43 = vld [vmem:[#allocation5 + $0x20] sm:$0xff]
    %v44 = vld [vmem:[#allocation5 + $0x28] sm:$0xff]
    %v45 = vld [vmem:[#allocation5 + $0x30] sm:$0xff]
    %v46 = vld [vmem:[#allocation5 + $0x38] sm:$0xff]
    %v47 = vld [vmem:[#allocation5 + $0x40] sm:$0xff]
    %v48 = vld [vmem:[#allocation5 + $0x48] sm:$0xff]
    %v49 = vld [vmem:[#allocation5 + $0x50] sm:$0xff]
    %v50 = vld [vmem:[#allocation5 + $0x58] sm:$0xff]
    %v51 = vld [vmem:[#allocation5 + $0x60] sm:$0xff]
    %v52 = vld [vmem:[#allocation5 + $0x68] sm:$0xff]
    %v53 = vld [vmem:[#allocation5 + $0x70] sm:$0xff]
    %v54 = vld [vmem:[#allocation5 + $0x78] sm:$0xff]
    %v55 = vld [vmem:[#allocation5 + $0x80] sm:$0xff]
    %v56 = vld [vmem:[#allocation5 + $0x88] sm:$0xff]
    %v57 = vld [vmem:[#allocation5 + $0x90] sm:$0xff]
    %v58 = vld [vmem:[#allocation5 + $0x98] sm:$0xff]
    %v59 = vld [vmem:[#allocation5 + $0xa0] sm:$0x1]
    %v60 = vld [vmem:[#allocation5 + $0xa8] sm:$0xff]
    %v61 = vld [vmem:[#allocation5 + $0xb0] sm:$0xff]
    %v62 = vld [vmem:[#allocation5 + $0xb8] sm:$0xff]
    %v63 = vld [vmem:[#allocation5 + $0xc0] sm:$0xff]
    %v64 = vld [vmem:[#allocation5 + $0xc8] sm:$0xff]
    %v65 = vld [vmem:[#allocation5 + $0xd0] sm:$0xff]
    %v66 = vld [vmem:[#allocation5 + $0xd8] sm:$0xff]
    %v67 = vld [vmem:[#allocation5 + $0xe0] sm:$0xff]
    %v68 = vld [vmem:[#allocation5 + $0xe8] sm:$0xff]
    %v69 = vld [vmem:[#allocation5 + $0xf0] sm:$0xff]
    %v70 = vld [vmem:[#allocation5 + $0xf8] sm:$0xff]
    %v71 = vld [vmem:[#allocation5 + $0x100] sm:$0xff]
    %v72 = vld [vmem:[#allocation5 + $0x108] sm:$0xff]
    %v73 = vld [vmem:[#allocation5 + $0x110] sm:$0xff]
    %v74 = vld [vmem:[#allocation5 + $0x118] sm:$0xff]
    %v75 = vld [vmem:[#allocation5 + $0x120] sm:$0xff]
    %v76 = vld [vmem:[#allocation5 + $0x128] sm:$0x1]
    %v77 = vlaneseq
    %v78 = vshrl.u32 %v77, 7
    %v79 = vsub.s32 0, %v78
    %v80 = vrot.slane %v42, %v79
    %vm81 = vcmask 195584
    %v83 = vsel %vm81, %v38, 0
    %85 = vmatprep.subr.mxu0 0.0
    %86 = vmatpush1.msra.mxu0 0.0
    %87 = vmatprep.subr.mxu0 0.0
    %88 = vmatpush1.msra.mxu0 0.0
    %89 = vmatprep.subr.mxu0 0.0
    %90 = vmatpush1.msra.mxu0 0.0
    %91 = vmatprep.subr.mxu0 0.0
    %92 = vmatpush1.msra.mxu0 0.0
    %93 = vmatprep.subr.mxu0 0.0
    %94 = vmatpush1.msra.mxu0 0.0
    %95 = vmatprep.subr.mxu0 0.0
    %96 = vmatpush1.msra.mxu0 0.0
    %97 = vmatprep.subr.mxu0 0.0
    %98 = vmatpush1.msra.mxu0 0.0
    %99 = vmatprep.subr.mxu0 0.0
    %100 = vmatpush1.msra.mxu0 0.0
    %101 = vmatprep.subr.mxu0 0.0
    %102 = vmatpush1.msra.mxu0 0.0
    %103 = vmatprep.subr.mxu0 0.0
    %104 = vmatpush1.msra.mxu0 0.0
    %105 = vmatprep.subr.mxu0 0.0
    %106 = vmatpush1.msra.mxu0 0.0
    %107 = vmatprep.subr.mxu0 0.0
    %108 = vmatpush1.msra.mxu0 0.0
    %109 = vmatprep.subr.mxu0 0.0
    %110 = vmatpush1.msra.mxu0 0.0
    %111 = vmatprep.subr.mxu0 0.0
    %112 = vmatpush1.msra.mxu0 %v41
    %113 = vmatprep.subr.mxu0 0.0
    %114 = vmatpush1.msra.mxu0 %v40
    %115 = vmatprep.subr.mxu0 0.0
    %116 = vmatpush1.msra.mxu0 %v39
    %117 = vmatprep.subr.mxu0 0.0
    %118 = vmatpush2.msra.mxu0 0.0
    %119 = vmatprep.subr.mxu0 0.0
    %120 = vmatpush2.msra.mxu0 0.0
    %121 = vmatprep.subr.mxu0 0.0
    %122 = vmatpush2.msra.mxu0 0.0
    %123 = vmatprep.subr.mxu0 0.0
    %124 = vmatpush2.msra.mxu0 0.0
    %125 = vmatprep.subr.mxu0 0.0
    %126 = vmatpush2.msra.mxu0 0.0
    %127 = vmatprep.subr.mxu0 0.0
    %128 = vmatpush2.msra.mxu0 0.0
    %129 = vmatprep.subr.mxu0 0.0
    %130 = vmatpush2.msra.mxu0 0.0
    %131 = vmatprep.subr.mxu0 0.0
    %132 = vmatpush2.msra.mxu0 0.0
    %133 = vmatprep.subr.mxu0 0.0
    %134 = vmatpush2.msra.mxu0 0.0
    %135 = vmatprep.subr.mxu0 0.0
    %136 = vmatpush2.msra.mxu0 0.0
    %137 = vmatprep.subr.mxu0 0.0
    %138 = vmatpush2.msra.mxu0 0.0
    %139 = vmatprep.subr.mxu0 0.0
    %140 = vmatpush2.msra.mxu0 0.0
    %141 = vmatprep.subr.mxu0 0.0
    %142 = vmatpush2.msra.mxu0 0.0
    %143 = vmatprep.subr.mxu0 0.0
    %144 = vmatpush2.msra.mxu0 0.0
    %145 = vmatprep.subr.mxu0 0.0
    %146 = vmatpush2.msra.mxu0 0.0
    %147 = vmatprep.subr.mxu0 0.0
    %148 = vmatpush2.msra.mxu0 0.0
    %149 = vmatprep.mubr.f32.mxu0 0.0
    %150 = vmatmul.mubr.f32.gmra.mxu0 %v83
    %v151 = vpop.f32.mrf.mxu0
    %v152 = vadd.f32 %v80, %v151
    %v153 = vpop.f32.mrf.mxu0
    %154 = vdwg.mxu0
    %v155 = vmul.f32 %v152, 0.01
    %v156 = vmax.f32 %v152, %v155
    %v157 = vlaneseq
    %v158 = vshrl.u32 %v157, 7
    %v159 = vsub.s32 0, %v158
    %v160 = vrot.slane %v59, %v159
    %161 = vmatprep.subr.mxu0 0.0
    %162 = vmatpush1.msra.mxu0 %v58
    %163 = vmatprep.subr.mxu0 0.0
    %164 = vmatpush1.msra.mxu0 %v57
    %165 = vmatprep.subr.mxu0 0.0
    %166 = vmatpush1.msra.mxu0 %v56
    %167 = vmatprep.subr.mxu0 0.0
    %168 = vmatpush1.msra.mxu0 %v55
    %169 = vmatprep.subr.mxu0 0.0
    %170 = vmatpush1.msra.mxu0 %v54
    %171 = vmatprep.subr.mxu0 0.0
    %172 = vmatpush1.msra.mxu0 %v53
    %173 = vmatprep.subr.mxu0 0.0
    %174 = vmatpush1.msra.mxu0 %v52
    %175 = vmatprep.subr.mxu0 0.0
    %176 = vmatpush1.msra.mxu0 %v51
    %177 = vmatprep.subr.mxu0 0.0
    %178 = vmatpush1.msra.mxu0 %v50
    %179 = vmatprep.subr.mxu0 0.0
    %180 = vmatpush1.msra.mxu0 %v49
    %181 = vmatprep.subr.mxu0 0.0
    %182 = vmatpush1.msra.mxu0 %v48
    %183 = vmatprep.subr.mxu0 0.0
    %184 = vmatpush1.msra.mxu0 %v47
    %185 = vmatprep.subr.mxu0 0.0
    %186 = vmatpush1.msra.mxu0 %v46
    %187 = vmatprep.subr.mxu0 0.0
    %188 = vmatpush1.msra.mxu0 %v45
    %189 = vmatprep.subr.mxu0 0.0
    %190 = vmatpush1.msra.mxu0 %v44
    %191 = vmatprep.subr.mxu0 0.0
    %192 = vmatpush1.msra.mxu0 %v43
    %193 = vmatprep.subr.mxu0 0.0
    %194 = vmatpush2.msra.mxu0 0.0
    %195 = vmatprep.subr.mxu0 0.0
    %196 = vmatpush2.msra.mxu0 0.0
    %197 = vmatprep.subr.mxu0 0.0
    %198 = vmatpush2.msra.mxu0 0.0
    %199 = vmatprep.subr.mxu0 0.0
    %200 = vmatpush2.msra.mxu0 0.0
    %201 = vmatprep.subr.mxu0 0.0
    %202 = vmatpush2.msra.mxu0 0.0
    %203 = vmatprep.subr.mxu0 0.0
    %204 = vmatpush2.msra.mxu0 0.0
    %205 = vmatprep.subr.mxu0 0.0
    %206 = vmatpush2.msra.mxu0 0.0
    %207 = vmatprep.subr.mxu0 0.0
    %208 = vmatpush2.msra.mxu0 0.0
    %209 = vmatprep.subr.mxu0 0.0
    %210 = vmatpush2.msra.mxu0 0.0
    %211 = vmatprep.subr.mxu0 0.0
    %212 = vmatpush2.msra.mxu0 0.0
    %213 = vmatprep.subr.mxu0 0.0
    %214 = vmatpush2.msra.mxu0 0.0
    %215 = vmatprep.subr.mxu0 0.0
    %216 = vmatpush2.msra.mxu0 0.0
    %217 = vmatprep.subr.mxu0 0.0
    %218 = vmatpush2.msra.mxu0 0.0
    %219 = vmatprep.subr.mxu0 0.0
    %220 = vmatpush2.msra.mxu0 0.0
    %221 = vmatprep.subr.mxu0 0.0
    %222 = vmatpush2.msra.mxu0 0.0
    %223 = vmatprep.subr.mxu0 0.0
    %224 = vmatpush2.msra.mxu0 0.0
    %225 = vmatprep.mubr.f32.mxu0 0.0
    %226 = vmatmul.mubr.f32.gmra.mxu0 %v156
    %v227 = vpop.f32.mrf.mxu0
    %v228 = vadd.f32 %v160, %v227
    %v229 = vpop.f32.mrf.mxu0
    %230 = vdwg.mxu0
    %v231 = vmul.f32 %v228, 0.01
    %v232 = vmax.f32 %v228, %v231
    %v233 = vlaneseq
    %v234 = vshrl.u32 %v233, 7
    %v235 = vsub.s32 0, %v234
    %v236 = vrot.slane %v76, %v235
    %237 = vmatprep.subr.mxu0 0.0
    %238 = vmatpush1.msra.mxu0 %v75
    %239 = vmatprep.subr.mxu0 0.0
    %240 = vmatpush1.msra.mxu0 %v74
    %241 = vmatprep.subr.mxu0 0.0
    %242 = vmatpush1.msra.mxu0 %v73
    %243 = vmatprep.subr.mxu0 0.0
    %244 = vmatpush1.msra.mxu0 %v72
    %245 = vmatprep.subr.mxu0 0.0
    %246 = vmatpush1.msra.mxu0 %v71
    %247 = vmatprep.subr.mxu0 0.0
    %248 = vmatpush1.msra.mxu0 %v70
    %249 = vmatprep.subr.mxu0 0.0
    %250 = vmatpush1.msra.mxu0 %v69
    %251 = vmatprep.subr.mxu0 0.0
    %252 = vmatpush1.msra.mxu0 %v68
    %253 = vmatprep.subr.mxu0 0.0
    %254 = vmatpush1.msra.mxu0 %v67
    %255 = vmatprep.subr.mxu0 0.0
    %256 = vmatpush1.msra.mxu0 %v66
    %257 = vmatprep.subr.mxu0 0.0
    %258 = vmatpush1.msra.mxu0 %v65
    %259 = vmatprep.subr.mxu0 0.0
    %260 = vmatpush1.msra.mxu0 %v64
    %261 = vmatprep.subr.mxu0 0.0
    %262 = vmatpush1.msra.mxu0 %v63
    %263 = vmatprep.subr.mxu0 0.0
    %264 = vmatpush1.msra.mxu0 %v62
    %265 = vmatprep.subr.mxu0 0.0
    %266 = vmatpush1.msra.mxu0 %v61
    %267 = vmatprep.subr.mxu0 0.0
    %268 = vmatpush1.msra.mxu0 %v60
    %269 = vmatprep.subr.mxu0 0.0
    %270 = vmatpush2.msra.mxu0 0.0
    %271 = vmatprep.subr.mxu0 0.0
    %272 = vmatpush2.msra.mxu0 0.0
    %273 = vmatprep.subr.mxu0 0.0
    %274 = vmatpush2.msra.mxu0 0.0
    %275 = vmatprep.subr.mxu0 0.0
    %276 = vmatpush2.msra.mxu0 0.0
    %277 = vmatprep.subr.mxu0 0.0
    %278 = vmatpush2.msra.mxu0 0.0
    %279 = vmatprep.subr.mxu0 0.0
    %280 = vmatpush2.msra.mxu0 0.0
    %281 = vmatprep.subr.mxu0 0.0
    %282 = vmatpush2.msra.mxu0 0.0
    %283 = vmatprep.subr.mxu0 0.0
    %284 = vmatpush2.msra.mxu0 0.0
    %285 = vmatprep.subr.mxu0 0.0
    %286 = vmatpush2.msra.mxu0 0.0
    %287 = vmatprep.subr.mxu0 0.0
    %288 = vmatpush2.msra.mxu0 0.0
    %289 = vmatprep.subr.mxu0 0.0
    %290 = vmatpush2.msra.mxu0 0.0
    %291 = vmatprep.subr.mxu0 0.0
    %292 = vmatpush2.msra.mxu0 0.0
    %293 = vmatprep.subr.mxu0 0.0
    %294 = vmatpush2.msra.mxu0 0.0
    %295 = vmatprep.subr.mxu0 0.0
    %296 = vmatpush2.msra.mxu0 0.0
    %297 = vmatprep.subr.mxu0 0.0
    %298 = vmatpush2.msra.mxu0 0.0
    %299 = vmatprep.subr.mxu0 0.0
    %300 = vmatpush2.msra.mxu0 0.0
    %301 = vmatprep.mubr.f32.mxu0 0.0
    %302 = vmatmul.mubr.f32.gmra.mxu0 %v232
    %v303 = vpop.f32.mrf.mxu0
    %v304 = vadd.f32 %v236, %v303
    %v305 = vpop.f32.mrf.mxu0
    %306 = vdwg.mxu0
    %v307 = vmul.f32 %v304, 0.5
    %v308 = vtanh.pop %v307
    %v309 = vadd.f32 %v308, 1.0
    %v310 = vmul.f32 %v309, 0.5
    %vm311 = vcmask 261120
    %312 = vst.msk [vmem:[#allocation7] sm:$0xff] %vm311, %v310
    // Predicated region
    $region18: #{tpu_custom_call.1} parent=1 // pred_check
      _
    $region19: #{tpu_custom_call.1} parent=1 // pred_check_branch
      %314 = sbr.rel (0) target = $region21
    $region20: #{tpu_custom_call.1} parent=1 // pred_region
      %s316 = ssub.s32 128, 128
      %317 = vsyncadd [#allocation4], %s316
      %s319 = sshll.u32 [#allocation7], 4
      %s320 = int_to_ptr.vmem [resolvable:$true] %s319
      %322 = dma.vmem_to_hbm [thread:$0]  %s320, 128, %s2, [#allocation4]
    $region21: #{tpu_custom_call.1} parent=1 // pred_fallthru
      _
    // Predicated region
    $region22: #{tpu_custom_call.1} parent=1 // pred_check
      _
    $region23: #{tpu_custom_call.1} parent=1 // pred_check_branch
      %324 = sbr.rel (0) target = $region25
    $region24: #{tpu_custom_call.1} parent=1 // pred_region
      %325 = dma.done [#allocation4], 128
    $region25: #{tpu_custom_call.1} parent=1 // pred_fallthru
      _
    %326 = vsyncpa [#allocation3], 1
    %327 = vsyncpa [#allocation6], 1
    %328 = vsyncpa [#allocation4], 1

</llo_original>
